<compile_context>
chip_gen: v7x
topology: tpu7x:2x2x1
jax: 0.10.0
libtpu: 0.0.40
codegen_flags: <defaults>
</compile_context>

<pallas_src>
import functools

import jax
import jax.numpy as jnp
from jax.experimental import pallas as pl
from jax.experimental.pallas import tpu as pltpu

_LANES = 128

# Perf-review item: for micro-sized inputs (<~256 KiB) a fused XLA
# elementwise/broadcast is cheaper than a pallas_call launch.  Set to e.g.
# 256 << 10 in production; kept at 0 here so the demo exercises the kernel.
_XLA_FALLBACK_BYTES = 0


# ----------------------------- Pallas kernels ------------------------------ #

def _mul0_kernel(x_ref, o_ref):
    # Faithful to torch's x.mul(0.0): propagates NaN/Inf (and -0.0) from x.
    v = x_ref[...]
    o_ref[...] = (v * jnp.zeros((), dtype=v.dtype)).astype(o_ref.dtype)


def _zeros_kernel(o_ref):
    # torch's x.new_zeros path -- pure streaming write, no input DMA.
    o_ref[...] = jnp.zeros_like(o_ref)


# ------------------------------ tile sizing -------------------------------- #

def _round_up(a, b):
    return -(-a // b) * b


def _hw_block_params(itemsize):
    """Per-chip block sizing: ~VMEM/16 per block, [1 MiB, 8 MiB]."""
    vmem_cap = 64 << 20                    # conservative default (v7x-sized)
    try:
        info = pltpu.get_tpu_info()
        vmem_cap = int(getattr(info, "vmem_capacity_bytes", vmem_cap)) or vmem_cap
    except Exception:
        pass
    block_bytes = max(1 << 20, min(8 << 20, vmem_cap // 16))
    # in + out, double-buffered -> 4x block_bytes; leave generous headroom.
    vmem_limit = int(min(vmem_cap // 2, 64 << 20))
    # dtype-aware sublane multiple: 8 rows f32, 16 bf16, 32 int8/fp8.
    sublane_mult = 8 * max(1, 4 // max(1, int(itemsize)))
    return block_bytes, vmem_limit, sublane_mult


def _row_tile(rows, row_bytes, block_bytes, sublane_mult, slab_bytes):
    """Rows per block: fill the VMEM budget, keep >=2 grid steps for big slabs
    (v7x megacore), keep interior blocks sublane-aligned (unmasked stores)."""
    tile = max(1, block_bytes // max(1, row_bytes))
    if slab_bytes >= (2 << 20):
        tile = min(tile, -(-rows // 2))        # force at least 2 grid steps
    tile = min(tile, rows)
    if tile < rows:
        tile = max(sublane_mult, (tile // sublane_mult) * sublane_mult)
        tile = min(tile, rows)
    return tile


# --------------------------- pallas_call helpers --------------------------- #

def _mul_zero_pallas(x):
    """x * 0.0 via a single pallas_call; no padding, no post-slice."""
    total = x.size
    itemsize = x.dtype.itemsize
    block_bytes, vmem_limit, sublane_mult = _hw_block_params(itemsize)
    orig_shape = x.shape

    if total % _LANES == 0:
        rows, width = total // _LANES, _LANES          # lane-dense slab (free reshape)
    else:
        width = orig_shape[-1]
        rows = total // width                          # full-extent trailing dim
    slab = x.reshape(rows, width)

    tile = _row_tile(rows, width * itemsize, block_bytes, sublane_mult,
                     total * itemsize)
    grid = pl.cdiv(rows, tile)

    out = pl.pallas_call(
        _mul0_kernel,
        out_shape=jax.ShapeDtypeStruct((rows, width), x.dtype),
        grid=(grid,),
        in_specs=[pl.BlockSpec((tile, width), lambda i: (i, 0))],
        out_specs=pl.BlockSpec((tile, width), lambda i: (i, 0)),
        compiler_params=pltpu.CompilerParams(
            dimension_semantics=("parallel",),
            vmem_limit_bytes=vmem_limit),
    )(slab)
    return out.reshape(orig_shape)


def _zeros_pallas(out_shape4, dtype):
    """Streaming zero-fill of exactly prod(out_shape4) elements."""
    N, C_out, H_out, W_out = out_shape4
    total = N * C_out * H_out * W_out
    itemsize = jnp.dtype(dtype).itemsize
    block_bytes, vmem_limit, sublane_mult = _hw_block_params(itemsize)

    if total % _LANES == 0:
        rows, width = total // _LANES, _LANES
        tile = _row_tile(rows, width * itemsize, block_bytes, sublane_mult,
                         total * itemsize)
        out = pl.pallas_call(
            _zeros_kernel,
            out_shape=jax.ShapeDtypeStruct((rows, width), dtype),
            grid=(pl.cdiv(rows, tile),),
            out_specs=pl.BlockSpec((tile, width), lambda i: (i, 0)),
            compiler_params=pltpu.CompilerParams(
                dimension_semantics=("parallel",),
                vmem_limit_bytes=vmem_limit),
        )()
    else:
        nc = N * C_out
        plane_bytes = H_out * W_out * itemsize
        bc = _row_tile(nc, plane_bytes, block_bytes, 1, total * itemsize)
        out = pl.pallas_call(
            _zeros_kernel,
            out_shape=jax.ShapeDtypeStruct((nc, H_out, W_out), dtype),
            grid=(pl.cdiv(nc, bc),),
            out_specs=pl.BlockSpec((bc, H_out, W_out), lambda i: (i, 0, 0)),
            compiler_params=pltpu.CompilerParams(
                dimension_semantics=("parallel",),
                vmem_limit_bytes=vmem_limit),
        )()
    return out.reshape(out_shape4)


# ------------------------------- wrapper ----------------------------------- #

@functools.partial(jax.jit, static_argnames=("C_in", "C_out", "stride"))
def zero_forward(x, *, C_in, C_out, stride):
    """Pallas implementation of Zero.forward.  x: [N, C_in, H, W] (NCHW)."""
    N, C, H, W = x.shape
    assert C == C_in, "input channel mismatch"

    if C_in == C_out:
        if stride != 1:
            # TODO(synk): fuse this strided subsample into the kernel BlockSpec.
            x = x[:, :, ::stride, ::stride]
        if _XLA_FALLBACK_BYTES and x.size * x.dtype.itemsize < _XLA_FALLBACK_BYTES:
            return x * jnp.zeros((), dtype=x.dtype)
        return _mul_zero_pallas(x)

    # C_in != C_out: fresh zeros with torch's shape formula.
    H_out = (H + 1) // stride
    W_out = (W + 1) // stride
    out_shape = (N, C_out, H_out, W_out)
    if _XLA_FALLBACK_BYTES and (N * C_out * H_out * W_out * x.dtype.itemsize
                                < _XLA_FALLBACK_BYTES):
        return jnp.zeros(out_shape, dtype=x.dtype)
    return _zeros_pallas(out_shape, x.dtype)


# ------------------------------ reference ---------------------------------- #

def _reference(x, *, C_in, C_out, stride):
    if C_in == C_out:
        if stride == 1:
            return x * 0.0
        return x[:, :, ::stride, ::stride] * 0.0
    N, _, H, W = x.shape
    return jnp.zeros((N, C_out, (H + 1) // stride, (W + 1) // stride), x.dtype)


def _same(a, b):
    if a.shape != b.shape or a.dtype != b.dtype:
        return False
    return bool(jnp.all((a == b) | (jnp.isnan(a) & jnp.isnan(b))))


# --------------------------------- main ------------------------------------ #

if __name__ == "__main__":
    key = jax.random.PRNGKey(0)
    x = jax.random.normal(key, (2, 4, 16, 16), dtype=jnp.float32)
    # Exercise torch-mul(0.0) semantics: NaN must propagate on the mul paths.
    x = x.at[0, 0, 0, 0].set(jnp.nan)

    cases = [
        dict(C_in=4, C_out=4, stride=1),   # x.mul(0.0)
        dict(C_in=4, C_out=4, stride=2),   # x[:, :, ::2, ::2].mul(0.0)
        dict(C_in=4, C_out=8, stride=2),   # new_zeros([2, 8, 8, 8])
    ]

    for cfg in cases:
        out = jax.block_until_ready(zero_forward(x, **cfg))
        ref = _reference(x, **cfg)
        assert _same(out, ref), (cfg, out.shape, ref.shape, out.dtype, ref.dtype)

    print("KERNEL_OK")
</pallas_src>

<mosaic_0001>
module attributes {stable_mosaic.version = 11 : i64} {
  func.func @_mul0_kernel(%arg0: i32, %arg1: memref<16x128xf32, #tpu.memory_space<vmem>>, %arg2: memref<16x128xf32, #tpu.memory_space<vmem>>) attributes {dimension_semantics = [#tpu.dimension_semantics<parallel>], iteration_bounds = array<i64: 1>, scalar_prefetch = 0 : i64, scratch_operands = 0 : i64, tpu.core_type = #tpu.core_type<tc>, window_params = [{transform_indices = @transform_0, window_bounds = array<i64: 16, 128>}, {transform_indices = @transform_1, window_bounds = array<i64: 16, 128>}]} {
    %c0 = arith.constant 0 : index
    %c0_0 = arith.constant 0 : index
    %0 = vector.load %arg1[%c0, %c0_0] : memref<16x128xf32, #tpu.memory_space<vmem>>, vector<16x128xf32>
    %cst = arith.constant 0.000000e+00 : f32
    %1 = vector.broadcast %cst : f32 to vector<16x128xf32>
    %2 = arith.mulf %0, %1 : vector<16x128xf32>
    %c0_1 = arith.constant 0 : index
    %c0_2 = arith.constant 0 : index
    %3 = vector.load %arg2[%c0_1, %c0_2] : memref<16x128xf32, #tpu.memory_space<vmem>>, vector<16x128xf32>
    tpu.vector_store %arg2[%c0_1, %c0_2], %2 {strides = array<i32>} : memref<16x128xf32, #tpu.memory_space<vmem>>, vector<16x128xf32>,
    return
  }
  func.func @transform_0(%arg0: i32) -> (i32, i32) {
    %c0_i32 = arith.constant 0 : i32
    %c0_i32_0 = arith.constant 0 : i32
    return %arg0, %c0_i32 : i32, i32
  }
  func.func @transform_1(%arg0: i32) -> (i32, i32) {
    %c0_i32 = arith.constant 0 : i32
    %c0_i32_0 = arith.constant 0 : i32
    return %arg0, %c0_i32 : i32, i32
  }
}

</mosaic_0001>

<llo_original>
// kernel: zero_forward.1
$region0: #{zero_forward.1}
  #allocation0 [shape = 'u32[]', space=smem, size = 0x4, offset = 0x4, fixed_abs, tag = 'smem constant byte address 0x4 - core index']
  #allocation1 [shape = 'u32[144,128]{1,0:T(1,128)}', space=vmem, size = 0x12000, scoped, tag = 'internal scratch']
  %s0 = inlined_call_operand.vmem [shape: f32[16,128], index: 0, kind: input, shape index: {}]
  %s1 = inlined_call_operand.vmem [shape: f32[16,128], index: 1, kind: output, shape index: {}]
  %s2 = sld [smem:[#allocation0]]
  $region14: #{zero_forward.1} parent=0
    _
  %s4 = ssub.s32 1, %s2
  %s5 = scalar_select 0, %s4, %s2
  // Predicated region
  $region2: #{zero_forward.1} parent=0 // pred_check
    _
  $region3: #{zero_forward.1} parent=0 // pred_check_branch
    %7 = sbr.rel (0) target = $region5
  $region4: #{zero_forward.1} parent=0 // pred_region
    _
  $region5: #{zero_forward.1} parent=0 // pred_fallthru
    _
  %v8 = vld [vmem:[%s0] sm:$0xff]
  %v9 = vld [vmem:[%s0 + $0x8] sm:$0xff]
  %v10 = vmul.f32 %v8, 0.0
  %v11 = vmul.f32 %v9, 0.0
  %12 = vst [vmem:[%s1] sm:$0xff] %v10
  %13 = vst [vmem:[%s1 + $0x8] sm:$0xff] %v11
  // Predicated region
  $region6: #{zero_forward.1} parent=0 // pred_check
    _
  $region7: #{zero_forward.1} parent=0 // pred_check_branch
    %15 = sbr.rel (0) target = $region9
  $region8: #{zero_forward.1} parent=0 // pred_region
    _
  $region9: #{zero_forward.1} parent=0 // pred_fallthru
    _
  // Predicated region
  $region10: #{zero_forward.1} parent=0 // pred_check
    _
  $region11: #{zero_forward.1} parent=0 // pred_check_branch
    %17 = sbr.rel (0) target = $region13
  $region12: #{zero_forward.1} parent=0 // pred_region
    _
  $region13: #{zero_forward.1} parent=0 // pred_fallthru
    _

</llo_original>
